<compile_context>
chip_gen: v7x
topology: tpu7x:2x2x1
jax: 0.10.0
libtpu: 0.0.40
codegen_flags: <defaults>
</compile_context>

<pallas_src>
import math

import jax
import jax.numpy as jnp
from jax.experimental import pallas as pl
from jax.experimental.pallas import tpu as pltpu


def _periodic_kernel(x_ref, w_ref, p_ref, o_ref):
    # x_ref: (TB, Fg)     batch tile of inputs, native dtype
    # w_ref: (1, Fg*2K)   resident 2*pi*weight, duplicated [w_f | w_f] per feature
    # p_ref: (1, Fg*2K)   resident phase row ([0]*K + [-pi/2]*K per feature)
    # o_ref: (TB, Fg*2K)  lane-dense output tile
    fg = x_ref.shape[-1]
    row = w_ref.shape[-1]
    two_k = row // fg

    x = x_ref[...].astype(jnp.float32)          # in-kernel upcast (free on VPU)
    w = w_ref[...]                               # (1, row) f32

    # Build the lane-dense z row: per feature an implicit (TB,1)x(1,2K)
    # broadcast-multiply, assembled once with a minor-dim concat.
    # TODO(synk): for very large n_features add a feature-group grid axis
    # instead of statically unrolling all features here.
    parts = [x[:, f:f + 1] * w[:, f * two_k:(f + 1) * two_k] for f in range(fg)]
    z = parts[0] if fg == 1 else jnp.concatenate(parts, axis=-1)   # (TB, row)
    z = z + p_ref[...]                           # sin(z) = cos(z - pi/2)
    o_ref[...] = jnp.cos(z).astype(o_ref.dtype)  # one full-width store per tile


def _round_up(v, m):
    return ((v + m - 1) // m) * m


def _vmem_budget_bytes():
    """Generation-aware budget for double-buffered in+out blocks."""
    cap = None
    try:
        cap = getattr(pltpu.get_tpu_info(), "vmem_capacity_bytes", None)
    except Exception:
        cap = None
    if not cap:
        cap = 64 << 20            # v7x per-TensorCore physical VMEM (smallest)
    return int(min(24 << 20, cap // 3))


def _fold_factor(row, n, n_features):
    """Fold g batch rows into the lane axis so g*row is a multiple of 128."""
    if row % 128 == 0:
        return 1
    g = 128 // math.gcd(row, 128)
    if g <= 1 or n % g != 0 or g * n_features > 64:
        return 1
    return g


def periodic_forward(x, weight, *, out_dtype=None, target_block_bytes=4 << 20):
    """Pallas equivalent of _Periodic.forward: (..., F) -> (..., F, 2K)."""
    if x.ndim < 2:
        raise ValueError("The input must have at least two dimensions")
    n_features, k = weight.shape
    if x.shape[-1] != n_features:
        raise ValueError("last dim of x must equal n_features")
    out_dtype = x.dtype if out_dtype is None else jnp.dtype(out_dtype)

    lead_shape = x.shape[:-1]
    x2d = x.reshape(-1, n_features)              # native dtype: no HBM upcast copy
    n = x2d.shape[0]
    row = 2 * n_features * k
    if n == 0:
        return jnp.zeros((*lead_shape, n_features, 2 * k), out_dtype)

    # Batch->lane fold (free row-major reshapes) for 128-lane dense stores.
    g = _fold_factor(row, n, n_features)
    fg_total = g * n_features
    rowg = g * row
    ng = n // g
    if g > 1:
        x2d = x2d.reshape(ng, fg_total)

    # Resident weight / phase rows (tiny, f-major [w|w] and [0|-pi/2] per feature).
    w2 = (2.0 * math.pi) * weight.astype(jnp.float32)            # (F, K)
    w_dup = jnp.concatenate([w2, w2], axis=-1)                   # (F, 2K)
    w_row = jnp.tile(w_dup, (g, 1)).reshape(1, rowg)
    ph2k = jnp.concatenate([jnp.zeros((k,), jnp.float32),
                            jnp.full((k,), -0.5 * math.pi, jnp.float32)])
    phase_row = jnp.tile(ph2k, (fg_total,)).reshape(1, rowg)

    # ---- batch-tile selection -------------------------------------------
    itemsize_out = jnp.dtype(out_dtype).itemsize
    itemsize_in = jnp.dtype(x2d.dtype).itemsize
    mult = max(8 * max(1, 4 // itemsize_out), 8 * max(1, 4 // itemsize_in))

    budget = _vmem_budget_bytes()
    resident = rowg * 16                                         # w_row + phase_row
    per_row = 2 * (fg_total * itemsize_in + rowg * itemsize_out)  # double-buffered
    tb = max(mult, (target_block_bytes // max(1, rowg * itemsize_out)) // mult * mult)
    tb_cap = max(mult, max(0, budget - resident) // per_row // mult * mult)
    tb = min(tb, tb_cap)
    if ng >= 2 * mult:                 # >=2 grid steps: feeds both v7x TensorCores
        tb = min(tb, _round_up(pl.cdiv(ng, 2), mult))
    if tb >= ng:
        tb = ng                        # single full block (no divisibility needed)
    grid_n = pl.cdiv(ng, tb)

    out = pl.pallas_call(
        _periodic_kernel,
        out_shape=jax.ShapeDtypeStruct((ng, rowg), out_dtype),
        grid_spec=pltpu.PrefetchScalarGridSpec(
            num_scalar_prefetch=0,
            grid=(grid_n,),
            in_specs=[
                pl.BlockSpec((tb, fg_total), lambda i: (i, 0)),
                pl.BlockSpec((1, rowg), lambda i: (0, 0)),   # resident weight row
                pl.BlockSpec((1, rowg), lambda i: (0, 0)),   # resident phase row
            ],
            out_specs=pl.BlockSpec((tb, rowg), lambda i: (i, 0)),
        ),
        compiler_params=pltpu.CompilerParams(
            dimension_semantics=("parallel",),
            vmem_limit_bytes=int(budget),
        ),
    )(x2d, w_row, phase_row)

    # Free row-major reshape: (Ng, g*row) == (N, F*2K) -> (..., F, 2K).
    return out.reshape(*lead_shape, n_features, 2 * k)


def init_periodic_weight(key, n_features, k, sigma):
    """Equivalent of nn.init.trunc_normal_(w, 0, sigma, -3*sigma, 3*sigma)."""
    if sigma <= 0.0:
        raise ValueError(f"sigma must be positive, however: sigma={sigma!r}")
    w = jax.random.truncated_normal(key, -3.0, 3.0, (n_features, k), jnp.float32)
    return w * sigma


def periodic_reference(x, weight):
    z = 2.0 * math.pi * weight * x[..., None]
    return jnp.concatenate([jnp.cos(z), jnp.sin(z)], axis=-1)


if __name__ == "__main__":
    key = jax.random.PRNGKey(0)
    k_w, k_x1, k_x2 = jax.random.split(key, 3)

    n_features, k, sigma = 4, 8, 0.1
    weight = init_periodic_weight(k_w, n_features, k, sigma)

    # 3-D input: leading dims flattened in the wrapper; row = 2*F*K = 64 so the
    # batch->lane fold (g=2) makes stores 128-lane dense; 2 parallel grid steps.
    x1 = jax.random.normal(k_x1, (6, 32, n_features), jnp.float32)
    out1 = jax.block_until_ready(periodic_forward(x1, weight))
    ref1 = periodic_reference(x1, weight)
    assert out1.shape == (6, 32, n_features, 2 * k), out1.shape
    assert jnp.allclose(out1, ref1, atol=2e-5, rtol=2e-5), "mismatch vs reference (3-D)"

    # Ragged batch (fold disabled, single full block) exercises Pallas masking.
    x2 = jax.random.normal(k_x2, (13, n_features), jnp.float32)
    out2 = jax.block_until_ready(periodic_forward(x2, weight))
    ref2 = periodic_reference(x2, weight)
    assert out2.shape == (13, n_features, 2 * k), out2.shape
    assert jnp.allclose(out2, ref2, atol=2e-5, rtol=2e-5), "mismatch vs reference (ragged)"

    print("KERNEL_OK")
</pallas_src>

<mosaic_0001>
module attributes {stable_mosaic.version = 11 : i64} {
  func.func @_periodic_kernel(%arg0: i32, %arg1: memref<48x8xf32, #tpu.memory_space<vmem>>, %arg2: memref<1x128xf32, #tpu.memory_space<vmem>>, %arg3: memref<1x128xf32, #tpu.memory_space<vmem>>, %arg4: memref<48x128xf32, #tpu.memory_space<vmem>>) attributes {dimension_semantics = [#tpu.dimension_semantics<parallel>], iteration_bounds = array<i64: 2>, scalar_prefetch = 0 : i64, scratch_operands = 0 : i64, tpu.core_type = #tpu.core_type<tc>, window_params = [{transform_indices = @transform_0, window_bounds = array<i64: 48, 8>}, {pipeline_mode = #tpu.pipeline_mode<synchronous>, transform_indices = @transform_1, window_bounds = array<i64: 1, 128>}, {pipeline_mode = #tpu.pipeline_mode<synchronous>, transform_indices = @transform_2, window_bounds = array<i64: 1, 128>}, {transform_indices = @transform_3, window_bounds = array<i64: 48, 128>}]} {
    %c0 = arith.constant 0 : index
    %c0_0 = arith.constant 0 : index
    %0 = vector.load %arg1[%c0, %c0_0] : memref<48x8xf32, #tpu.memory_space<vmem>>, vector<48x8xf32>
    %c0_1 = arith.constant 0 : index
    %c0_2 = arith.constant 0 : index
    %1 = vector.load %arg2[%c0_1, %c0_2] : memref<1x128xf32, #tpu.memory_space<vmem>>, vector<1x128xf32>
    %2 = vector.extract_strided_slice %0 {offsets = [0, 0], sizes = [48, 1], strides = [1, 1]} : vector<48x8xf32> to vector<48x1xf32>
    %3 = vector.extract_strided_slice %1 {offsets = [0, 0], sizes = [1, 16], strides = [1, 1]} : vector<1x128xf32> to vector<1x16xf32>
    %4 = vector.broadcast %2 : vector<48x1xf32> to vector<48x16xf32>
    %5 = vector.broadcast %3 : vector<1x16xf32> to vector<48x16xf32>
    %6 = arith.mulf %4, %5 : vector<48x16xf32>
    %7 = vector.extract_strided_slice %0 {offsets = [0, 1], sizes = [48, 1], strides = [1, 1]} : vector<48x8xf32> to vector<48x1xf32>
    %8 = vector.extract_strided_slice %1 {offsets = [0, 16], sizes = [1, 16], strides = [1, 1]} : vector<1x128xf32> to vector<1x16xf32>
    %9 = vector.broadcast %7 : vector<48x1xf32> to vector<48x16xf32>
    %10 = vector.broadcast %8 : vector<1x16xf32> to vector<48x16xf32>
    %11 = arith.mulf %9, %10 : vector<48x16xf32>
    %12 = vector.extract_strided_slice %0 {offsets = [0, 2], sizes = [48, 1], strides = [1, 1]} : vector<48x8xf32> to vector<48x1xf32>
    %13 = vector.extract_strided_slice %1 {offsets = [0, 32], sizes = [1, 16], strides = [1, 1]} : vector<1x128xf32> to vector<1x16xf32>
    %14 = vector.broadcast %12 : vector<48x1xf32> to vector<48x16xf32>
    %15 = vector.broadcast %13 : vector<1x16xf32> to vector<48x16xf32>
    %16 = arith.mulf %14, %15 : vector<48x16xf32>
    %17 = vector.extract_strided_slice %0 {offsets = [0, 3], sizes = [48, 1], strides = [1, 1]} : vector<48x8xf32> to vector<48x1xf32>
    %18 = vector.extract_strided_slice %1 {offsets = [0, 48], sizes = [1, 16], strides = [1, 1]} : vector<1x128xf32> to vector<1x16xf32>
    %19 = vector.broadcast %17 : vector<48x1xf32> to vector<48x16xf32>
    %20 = vector.broadcast %18 : vector<1x16xf32> to vector<48x16xf32>
    %21 = arith.mulf %19, %20 : vector<48x16xf32>
    %22 = vector.extract_strided_slice %0 {offsets = [0, 4], sizes = [48, 1], strides = [1, 1]} : vector<48x8xf32> to vector<48x1xf32>
    %23 = vector.extract_strided_slice %1 {offsets = [0, 64], sizes = [1, 16], strides = [1, 1]} : vector<1x128xf32> to vector<1x16xf32>
    %24 = vector.broadcast %22 : vector<48x1xf32> to vector<48x16xf32>
    %25 = vector.broadcast %23 : vector<1x16xf32> to vector<48x16xf32>
    %26 = arith.mulf %24, %25 : vector<48x16xf32>
    %27 = vector.extract_strided_slice %0 {offsets = [0, 5], sizes = [48, 1], strides = [1, 1]} : vector<48x8xf32> to vector<48x1xf32>
    %28 = vector.extract_strided_slice %1 {offsets = [0, 80], sizes = [1, 16], strides = [1, 1]} : vector<1x128xf32> to vector<1x16xf32>
    %29 = vector.broadcast %27 : vector<48x1xf32> to vector<48x16xf32>
    %30 = vector.broadcast %28 : vector<1x16xf32> to vector<48x16xf32>
    %31 = arith.mulf %29, %30 : vector<48x16xf32>
    %32 = vector.extract_strided_slice %0 {offsets = [0, 6], sizes = [48, 1], strides = [1, 1]} : vector<48x8xf32> to vector<48x1xf32>
    %33 = vector.extract_strided_slice %1 {offsets = [0, 96], sizes = [1, 16], strides = [1, 1]} : vector<1x128xf32> to vector<1x16xf32>
    %34 = vector.broadcast %32 : vector<48x1xf32> to vector<48x16xf32>
    %35 = vector.broadcast %33 : vector<1x16xf32> to vector<48x16xf32>
    %36 = arith.mulf %34, %35 : vector<48x16xf32>
    %37 = vector.extract_strided_slice %0 {offsets = [0, 7], sizes = [48, 1], strides = [1, 1]} : vector<48x8xf32> to vector<48x1xf32>
    %38 = vector.extract_strided_slice %1 {offsets = [0, 112], sizes = [1, 16], strides = [1, 1]} : vector<1x128xf32> to vector<1x16xf32>
    %39 = vector.broadcast %37 : vector<48x1xf32> to vector<48x16xf32>
    %40 = vector.broadcast %38 : vector<1x16xf32> to vector<48x16xf32>
    %41 = arith.mulf %39, %40 : vector<48x16xf32>
    %42 = tpu.concatenate %6, %11, %16, %21, %26, %31, %36, %41 in 1 : vector<48x16xf32>, vector<48x16xf32>, vector<48x16xf32>, vector<48x16xf32>, vector<48x16xf32>, vector<48x16xf32>, vector<48x16xf32>, vector<48x16xf32> -> vector<48x128xf32>
    %c0_3 = arith.constant 0 : index
    %c0_4 = arith.constant 0 : index
    %43 = vector.load %arg3[%c0_3, %c0_4] : memref<1x128xf32, #tpu.memory_space<vmem>>, vector<1x128xf32>
    %44 = vector.broadcast %43 : vector<1x128xf32> to vector<48x128xf32>
    %45 = arith.addf %42, %44 : vector<48x128xf32>
    %46 = math.cos %45 : vector<48x128xf32>
    %c0_5 = arith.constant 0 : index
    %c0_6 = arith.constant 0 : index
    %47 = vector.load %arg4[%c0_5, %c0_6] : memref<48x128xf32, #tpu.memory_space<vmem>>, vector<48x128xf32>
    tpu.vector_store %arg4[%c0_5, %c0_6], %46 {strides = array<i32>} : memref<48x128xf32, #tpu.memory_space<vmem>>, vector<48x128xf32>,
    return
  }
  func.func @transform_0(%arg0: i32) -> (i32, i32) {
    %c0_i32 = arith.constant 0 : i32
    %c0_i32_0 = arith.constant 0 : i32
    return %arg0, %c0_i32 : i32, i32
  }
  func.func @transform_1(%arg0: i32) -> (i32, i32) {
    %c0_i32 = arith.constant 0 : i32
    %c0_i32_0 = arith.constant 0 : i32
    %c0_i32_1 = arith.constant 0 : i32
    return %c0_i32, %c0_i32_0 : i32, i32
  }
  func.func @transform_2(%arg0: i32) -> (i32, i32) {
    %c0_i32 = arith.constant 0 : i32
    %c0_i32_0 = arith.constant 0 : i32
    %c0_i32_1 = arith.constant 0 : i32
    return %c0_i32, %c0_i32_0 : i32, i32
  }
  func.func @transform_3(%arg0: i32) -> (i32, i32) {
    %c0_i32 = arith.constant 0 : i32
    %c0_i32_0 = arith.constant 0 : i32
    return %arg0, %c0_i32 : i32, i32
  }
}

</mosaic_0001>

<llo_original>
// kernel: tpu_custom_call.1
$region0: #{tpu_custom_call.1}
  #allocation0 [shape = 'u32[]', space=smem, size = 0x4, offset = 0x4, fixed_abs, tag = 'smem constant byte address 0x4 - core index']
  #allocation1 [shape = 'u32[144,128]{1,0:T(1,128)}', space=vmem, size = 0x12000, scoped, tag = 'internal scratch']
  %s0 = inlined_call_operand.vmem [shape: f32[96,8], index: 0, kind: input, shape index: {}]
  %s1 = inlined_call_operand.vmem [shape: f32[1,128], index: 1, kind: input, shape index: {}]
  %s2 = inlined_call_operand.vmem [shape: f32[1,128], index: 2, kind: input, shape index: {}]
  %s3 = inlined_call_operand.hbm [shape: f32[96,128], index: 3, kind: output, shape index: {}]
  %s4 = sld [smem:[#allocation0]]
  $region45: #{tpu_custom_call.1} parent=0
    _
  %s6 = ssub.s32 1, %s4
  %s7 = scalar_select 0, %s6, %s4
  $region1: #{tpu_custom_call.1} parent=0
    #allocation2 [shape = 'u8[49152]{0}', space=vmem, size = 0xc000, scoped, tag = 'output window, operand 0']
    #allocation3 [shape = 's32[2]{0}', space=sflag, size = 0x8, scoped, tag = 'scoped memory for tpu_custom_call.1']
    %8 = vsyncpa [#allocation3], 0
    %s9 = scalar_lea.sflag [#allocation3], 1
    %10 = vsyncpa %s9, 0
    loop: start=0, step=1, limit=4
    $region2: #{tpu_custom_call.1} parent=1 // loop_pre_header
      _
    $region3: #{tpu_custom_call.1} parent=1 // loop_header
      %s12 = sphi 0, %s16
      %p13 = scmp.ge.s32.totalorder %s12, 4
      %s22 = sphi 0, %s24
      %s25 = sphi 0, %s22
      %s26 = sphi 0, %s25
      %s42 = sphi 0, %s26
      %s46 = sphi 0, %s46
      %s48 = sphi 0, %s46
      %s49 = sphi 0, %s48
      %s63 = sphi 0, %s49
      %s67 = sphi 0, %s67
      %s69 = sphi 0, %s67
      %s70 = sphi 0, %s69
      %s84 = sphi 0, %s70
      %s90 = sphi 0, %s92
      %s93 = sphi 0, %s90
      %s94 = sphi 0, %s93
      %s110 = sphi 0, %s94
    $region4: #{tpu_custom_call.1} parent=1 // loop_header_branch
      %15 = sbr.rel (%p13) target = $region8
    $region5: #{tpu_custom_call.1} parent=1 // loop_body
      %s17 = ssub.s32 %s12, 1
      %s18 = ssub.s32 %s12, 2
      %s19 = sadd.s32 %s12, 1
      %s20 = ssub.s32 %s12, %s19
      %p21 = scmp.eq.s32.totalorder %s20, 0
      %s23 = sadd.s32 %s22, 1
      %s24 = scalar_select %p21, %s22, %s23
      %p27 = pneg %p21
      %p28 = scmp.eq.s32.totalorder %s12, 1
      %p29 = por %p27, %p28
      %p30 = scmp.ne.s32.totalorder %s22, %s25
      %p31 = scmp.eq.s32.totalorder %s12, 0
      %p32 = por %p30, %p31
      %p33 = scmp.ne.s32.totalorder %s22, %s25
      %p34 = scmp.eq.s32.totalorder %s17, 1
      %p35 = por %p33, %p34
      %p36 = scmp.ne.s32.totalorder %s25, %s26
      %p37 = scmp.eq.s32.totalorder %s17, 0
      %p38 = por %p36, %p37
      %p39 = scmp.ne.s32.totalorder %s25, %s26
      %p40 = scmp.eq.s32.totalorder %s18, 1
      %p41 = por %p39, %p40
      %p43 = scmp.ne.s32.totalorder %s26, %s42
      %p44 = scmp.eq.s32.totalorder %s18, 0
      %p45 = por %p43, %p44
      %s47 = sadd.s32 %s46, 1
      %p50 = scmp.eq.s32.totalorder %s12, 1
      %p51 = scmp.ne.s32.totalorder %s46, %s48
      %p52 = scmp.eq.s32.totalorder %s12, 0
      %p53 = por %p51, %p52
      %p54 = scmp.ne.s32.totalorder %s46, %s48
      %p55 = scmp.eq.s32.totalorder %s17, 1
      %p56 = por %p54, %p55
      %p57 = scmp.ne.s32.totalorder %s48, %s49
      %p58 = scmp.eq.s32.totalorder %s17, 0
      %p59 = por %p57, %p58
      %p60 = scmp.ne.s32.totalorder %s48, %s49
      %p61 = scmp.eq.s32.totalorder %s18, 1
      %p62 = por %p60, %p61
      %p64 = scmp.ne.s32.totalorder %s49, %s63
      %p65 = scmp.eq.s32.totalorder %s18, 0
      %p66 = por %p64, %p65
      %s68 = sadd.s32 %s67, 1
      %p71 = scmp.eq.s32.totalorder %s12, 1
      %p72 = scmp.ne.s32.totalorder %s67, %s69
      %p73 = scmp.eq.s32.totalorder %s12, 0
      %p74 = por %p72, %p73
      %p75 = scmp.ne.s32.totalorder %s67, %s69
      %p76 = scmp.eq.s32.totalorder %s17, 1
      %p77 = por %p75, %p76
      %p78 = scmp.ne.s32.totalorder %s69, %s70
      %p79 = scmp.eq.s32.totalorder %s17, 0
      %p80 = por %p78, %p79
      %p81 = scmp.ne.s32.totalorder %s69, %s70
      %p82 = scmp.eq.s32.totalorder %s18, 1
      %p83 = por %p81, %p82
      %p85 = scmp.ne.s32.totalorder %s70, %s84
      %p86 = scmp.eq.s32.totalorder %s18, 0
      %p87 = por %p85, %p86
      %s88 = ssub.s32 %s12, %s19
      %p89 = scmp.eq.s32.totalorder %s88, 0
      %s91 = sadd.s32 %s90, 1
      %s92 = scalar_select %p89, %s90, %s91
      %p95 = pneg %p89
      %p96 = scmp.eq.s32.totalorder %s12, 1
      %p97 = por %p95, %p96
      %p98 = scmp.ne.s32.totalorder %s90, %s93
      %p99 = scmp.eq.s32.totalorder %s12, 0
      %p100 = por %p98, %p99
      %p101 = scmp.ne.s32.totalorder %s90, %s93
      %p102 = scmp.eq.s32.totalorder %s17, 1
      %p103 = por %p101, %p102
      %p104 = scmp.ne.s32.totalorder %s93, %s94
      %p105 = scmp.eq.s32.totalorder %s17, 0
      %p106 = por %p104, %p105
      %p107 = scmp.ne.s32.totalorder %s93, %s94
      %p108 = scmp.eq.s32.totalorder %s18, 1
      %p109 = por %p107, %p108
      %p111 = scmp.ne.s32.totalorder %s94, %s110
      %p112 = scmp.eq.s32.totalorder %s18, 0
      %p113 = por %p111, %p112
      %p114 = scmp.le.s32.totalorder 1, %s12
      %p115 = scmp.lt.s32.totalorder %s12, 3
      %p116 = pnand %p114, %p115
      %p117 = pneg %p116
      // Predicated region
      $region9: #{tpu_custom_call.1} parent=5 // pred_check
        _
      $region10: #{tpu_custom_call.1} parent=5 // pred_check_branch
        %119 = sbr.rel (%p116) target = $region12
      $region11: #{tpu_custom_call.1} parent=5 // pred_region
        %s120 = ssub.s32 %s12, 1
        // Predicated region
        $region13: #{tpu_custom_call.1} parent=11 // pred_check
          %p121 = pneg %p59
        $region14: #{tpu_custom_call.1} parent=11 // pred_check_branch
          %123 = sbr.rel (%p121) target = $region16
        $region15: #{tpu_custom_call.1} parent=11 // pred_region
          _
        $region16: #{tpu_custom_call.1} parent=11 // pred_fallthru
          _
        // Predicated region
        $region17: #{tpu_custom_call.1} parent=11 // pred_check
          %p124 = pneg %p80
        $region18: #{tpu_custom_call.1} parent=11 // pred_check_branch
          %126 = sbr.rel (%p124) target = $region20
        $region19: #{tpu_custom_call.1} parent=11 // pred_region
          _
        $region20: #{tpu_custom_call.1} parent=11 // pred_fallthru
          _
      $region12: #{tpu_custom_call.1} parent=5 // pred_fallthru
        _
      %p127 = scmp.lt.s32.totalorder %s12, 2
      // Predicated region
      $region21: #{tpu_custom_call.1} parent=5 // pred_check
        %p128 = pneg %p127
      $region22: #{tpu_custom_call.1} parent=5 // pred_check_branch
        %130 = sbr.rel (%p128) target = $region24
      $region23: #{tpu_custom_call.1} parent=5 // pred_region
        // Predicated region
        $region25: #{tpu_custom_call.1} parent=23 // pred_check
          %p131 = pneg %p32
        $region26: #{tpu_custom_call.1} parent=23 // pred_check_branch
          %133 = sbr.rel (%p131) target = $region28
        $region27: #{tpu_custom_call.1} parent=23 // pred_region
          %s134 = smul.u32 6, %s12
          %p135 = scmp.lt.s32.totalorder %s134, 11
          %s136 = scalar_select %p135, %s134, 11
          %s137 = smul.addr %s136, 8
          %s138 = scalar_lea.vmem %s0, %s137
          %s139 = smul.u32 6, %s12
        $region28: #{tpu_custom_call.1} parent=23 // pred_fallthru
          _
      $region24: #{tpu_custom_call.1} parent=5 // pred_fallthru
        _
      %p140 = scmp.le.s32.totalorder 1, %s12
      %p141 = scmp.lt.s32.totalorder %s12, 3
      %p142 = pnand %p140, %p141
      %p143 = pneg %p142
      // Predicated region
      $region29: #{tpu_custom_call.1} parent=5 // pred_check
        _
      $region30: #{tpu_custom_call.1} parent=5 // pred_check_branch
        %145 = sbr.rel (%p142) target = $region32
      $region31: #{tpu_custom_call.1} parent=5 // pred_region
        %s146 = ssub.s32 %s12, 1
        %s147 = smul.u32 6, %s17
        %p148 = scmp.lt.s32.totalorder %s147, 11
        %s149 = scalar_select %p148, %s147, 11
        %s150 = smul.addr %s149, 8
        %s151 = scalar_lea.vmem %s0, %s150
        %p152 = pneg %p38
        %p153 = pneg %p35
        %p154 = pneg %p59
        %p155 = pneg %p56
        %p156 = pneg %p80
        %p157 = pneg %p77
        %p158 = pneg %p106
        %p159 = pneg %p103
        %s160 = sand.u32 %s93, 1
        %s161 = scalar_lea.sflag [#allocation3], %s160
        %s162 = sand.u32 %s93, 1
        %s163 = smul.addr %s162, 48
        %s164 = scalar_lea.vmem [#allocation2], %s163
        %s165 = smul.u32 6, %s17
        %p166 = scmp.lt.s32.totalorder %s165, 11
        %s167 = scalar_select %p166, %s165, 11
        %s168 = smul.addr %s167, 8
        %s169 = scalar_lea.vmem %s0, %s168
        %s170 = smul.u32 6, %s17
        %s171 = smul.u32 6, %s17
        %v172 = vld [vmem:[%s169] sm:$0xff]
        %v173 = vld [vmem:[%s169 + $0x8] sm:$0xff]
        %v174 = vld [vmem:[%s169 + $0x10] sm:$0xff]
        %v175 = vld [vmem:[%s169 + $0x18] sm:$0xff]
        %v176 = vld [vmem:[%s169 + $0x20] sm:$0xff]
        %v177 = vld [vmem:[%s169 + $0x28] sm:$0xff]
        %v178 = vld [vmem:[%s1] sm:$0x1]
        %180 = vset.pattern.permute.xlu0 0
        %181 = vperm.xlu0 %180, %v172
        %v182 = vpop.permute.xlu0 %181
        %185 = vset.pattern.permute.xlu0 0
        %186 = vperm.xlu0 %185, %v173
        %v187 = vpop.permute.xlu0 %186
        %190 = vset.pattern.permute.xlu0 0
        %191 = vperm.xlu0 %190, %v174
        %v192 = vpop.permute.xlu0 %191
        %195 = vset.pattern.permute.xlu0 0
        %196 = vperm.xlu0 %195, %v175
        %v197 = vpop.permute.xlu0 %196
        %200 = vset.pattern.permute.xlu0 0
        %201 = vperm.xlu0 %200, %v176
        %v202 = vpop.permute.xlu0 %201
        %205 = vset.pattern.permute.xlu0 0
        %206 = vperm.xlu0 %205, %v177
        %v207 = vpop.permute.xlu0 %206
        %v210 = vlaneseq
        %v211 = vshrl.u32 %v210, 7
        %v212 = vsub.s32 0, %v211
        %v213 = vrot.slane %v178, %v212
        %v215 = vmul.f32 %v182, %v213
        %v216 = vmul.f32 %v187, %v213
        %v217 = vmul.f32 %v192, %v213
        %v218 = vmul.f32 %v197, %v213
        %v219 = vmul.f32 %v202, %v213
        %v220 = vmul.f32 %v207, %v213
        %221 = vset.pattern.permute.xlu0 1
        %222 = vperm.xlu0 %221, %v172
        %v223 = vpop.permute.xlu0 %222
        %225 = vset.pattern.permute.xlu0 1
        %226 = vperm.xlu0 %225, %v173
        %v227 = vpop.permute.xlu0 %226
        %229 = vset.pattern.permute.xlu0 1
        %230 = vperm.xlu0 %229, %v174
        %v231 = vpop.permute.xlu0 %230
        %233 = vset.pattern.permute.xlu0 1
        %234 = vperm.xlu0 %233, %v175
        %v235 = vpop.permute.xlu0 %234
        %237 = vset.pattern.permute.xlu0 1
        %238 = vperm.xlu0 %237, %v176
        %v239 = vpop.permute.xlu0 %238
        %241 = vset.pattern.permute.xlu0 1
        %242 = vperm.xlu0 %241, %v177
        %v243 = vpop.permute.xlu0 %242
        %v245 = vmul.f32 %v223, %v213
        %v246 = vmul.f32 %v227, %v213
        %v247 = vmul.f32 %v231, %v213
        %v248 = vmul.f32 %v235, %v213
        %v249 = vmul.f32 %v239, %v213
        %v250 = vmul.f32 %v243, %v213
        %251 = vset.pattern.permute.xlu0 2
        %252 = vperm.xlu0 %251, %v172
        %v253 = vpop.permute.xlu0 %252
        %255 = vset.pattern.permute.xlu0 2
        %256 = vperm.xlu0 %255, %v173
        %v257 = vpop.permute.xlu0 %256
        %259 = vset.pattern.permute.xlu0 2
        %260 = vperm.xlu0 %259, %v174
        %v261 = vpop.permute.xlu0 %260
        %263 = vset.pattern.permute.xlu0 2
        %264 = vperm.xlu0 %263, %v175
        %v265 = vpop.permute.xlu0 %264
        %267 = vset.pattern.permute.xlu0 2
        %268 = vperm.xlu0 %267, %v176
        %v269 = vpop.permute.xlu0 %268
        %271 = vset.pattern.permute.xlu0 2
        %272 = vperm.xlu0 %271, %v177
        %v273 = vpop.permute.xlu0 %272
        %v275 = vmul.f32 %v253, %v213
        %v276 = vmul.f32 %v257, %v213
        %v277 = vmul.f32 %v261, %v213
        %v278 = vmul.f32 %v265, %v213
        %v279 = vmul.f32 %v269, %v213
        %v280 = vmul.f32 %v273, %v213
        %281 = vset.pattern.permute.xlu0 3
        %282 = vperm.xlu0 %281, %v172
        %v283 = vpop.permute.xlu0 %282
        %285 = vset.pattern.permute.xlu0 3
        %286 = vperm.xlu0 %285, %v173
        %v287 = vpop.permute.xlu0 %286
        %289 = vset.pattern.permute.xlu0 3
        %290 = vperm.xlu0 %289, %v174
        %v291 = vpop.permute.xlu0 %290
        %293 = vset.pattern.permute.xlu0 3
        %294 = vperm.xlu0 %293, %v175
        %v295 = vpop.permute.xlu0 %294
        %297 = vset.pattern.permute.xlu0 3
        %298 = vperm.xlu0 %297, %v176
        %v299 = vpop.permute.xlu0 %298
        %301 = vset.pattern.permute.xlu0 3
        %302 = vperm.xlu0 %301, %v177
        %v303 = vpop.permute.xlu0 %302
        %v305 = vmul.f32 %v283, %v213
        %v306 = vmul.f32 %v287, %v213
        %v307 = vmul.f32 %v291, %v213
        %v308 = vmul.f32 %v295, %v213
        %v309 = vmul.f32 %v299, %v213
        %v310 = vmul.f32 %v303, %v213
        %311 = vset.pattern.permute.xlu0 4
        %312 = vperm.xlu0 %311, %v172
        %v313 = vpop.permute.xlu0 %312
        %315 = vset.pattern.permute.xlu0 4
        %316 = vperm.xlu0 %315, %v173
        %v317 = vpop.permute.xlu0 %316
        %319 = vset.pattern.permute.xlu0 4
        %320 = vperm.xlu0 %319, %v174
        %v321 = vpop.permute.xlu0 %320
        %323 = vset.pattern.permute.xlu0 4
        %324 = vperm.xlu0 %323, %v175
        %v325 = vpop.permute.xlu0 %324
        %327 = vset.pattern.permute.xlu0 4
        %328 = vperm.xlu0 %327, %v176
        %v329 = vpop.permute.xlu0 %328
        %331 = vset.pattern.permute.xlu0 4
        %332 = vperm.xlu0 %331, %v177
        %v333 = vpop.permute.xlu0 %332
        %v335 = vmul.f32 %v313, %v213
        %v336 = vmul.f32 %v317, %v213
        %v337 = vmul.f32 %v321, %v213
        %v338 = vmul.f32 %v325, %v213
        %v339 = vmul.f32 %v329, %v213
        %v340 = vmul.f32 %v333, %v213
        %341 = vset.pattern.permute.xlu0 5
        %342 = vperm.xlu0 %341, %v172
        %v343 = vpop.permute.xlu0 %342
        %345 = vset.pattern.permute.xlu0 5
        %346 = vperm.xlu0 %345, %v173
        %v347 = vpop.permute.xlu0 %346
        %349 = vset.pattern.permute.xlu0 5
        %350 = vperm.xlu0 %349, %v174
        %v351 = vpop.permute.xlu0 %350
        %353 = vset.pattern.permute.xlu0 5
        %354 = vperm.xlu0 %353, %v175
        %v355 = vpop.permute.xlu0 %354
        %357 = vset.pattern.permute.xlu0 5
        %358 = vperm.xlu0 %357, %v176
        %v359 = vpop.permute.xlu0 %358
        %361 = vset.pattern.permute.xlu0 5
        %362 = vperm.xlu0 %361, %v177
        %v363 = vpop.permute.xlu0 %362
        %v365 = vmul.f32 %v343, %v213
        %v366 = vmul.f32 %v347, %v213
        %v367 = vmul.f32 %v351, %v213
        %v368 = vmul.f32 %v355, %v213
        %v369 = vmul.f32 %v359, %v213
        %v370 = vmul.f32 %v363, %v213
        %371 = vset.pattern.permute.xlu0 6
        %372 = vperm.xlu0 %371, %v172
        %v373 = vpop.permute.xlu0 %372
        %375 = vset.pattern.permute.xlu0 6
        %376 = vperm.xlu0 %375, %v173
        %v377 = vpop.permute.xlu0 %376
        %379 = vset.pattern.permute.xlu0 6
        %380 = vperm.xlu0 %379, %v174
        %v381 = vpop.permute.xlu0 %380
        %383 = vset.pattern.permute.xlu0 6
        %384 = vperm.xlu0 %383, %v175
        %v385 = vpop.permute.xlu0 %384
        %387 = vset.pattern.permute.xlu0 6
        %388 = vperm.xlu0 %387, %v176
        %v389 = vpop.permute.xlu0 %388
        %391 = vset.pattern.permute.xlu0 6
        %392 = vperm.xlu0 %391, %v177
        %v393 = vpop.permute.xlu0 %392
        %v395 = vmul.f32 %v373, %v213
        %v396 = vmul.f32 %v377, %v213
        %v397 = vmul.f32 %v381, %v213
        %v398 = vmul.f32 %v385, %v213
        %v399 = vmul.f32 %v389, %v213
        %v400 = vmul.f32 %v393, %v213
        %401 = vset.pattern.permute.xlu0 7
        %402 = vperm.xlu0 %401, %v172
        %v403 = vpop.permute.xlu0 %402
        %405 = vset.pattern.permute.xlu0 7
        %406 = vperm.xlu0 %405, %v173
        %v407 = vpop.permute.xlu0 %406
        %409 = vset.pattern.permute.xlu0 7
        %410 = vperm.xlu0 %409, %v174
        %v411 = vpop.permute.xlu0 %410
        %413 = vset.pattern.permute.xlu0 7
        %414 = vperm.xlu0 %413, %v175
        %v415 = vpop.permute.xlu0 %414
        %417 = vset.pattern.permute.xlu0 7
        %418 = vperm.xlu0 %417, %v176
        %v419 = vpop.permute.xlu0 %418
        %421 = vset.pattern.permute.xlu0 7
        %422 = vperm.xlu0 %421, %v177
        %v423 = vpop.permute.xlu0 %422
        %v425 = vmul.f32 %v403, %v213
        %v426 = vmul.f32 %v407, %v213
        %v427 = vmul.f32 %v411, %v213
        %v428 = vmul.f32 %v415, %v213
        %v429 = vmul.f32 %v419, %v213
        %v430 = vmul.f32 %v423, %v213
        %vm431 = vcmask 130048
        %v432 = vsel %vm431, %v215, %v245
        %v433 = vsel %vm431, %v216, %v246
        %v434 = vsel %vm431, %v217, %v247
        %v435 = vsel %vm431, %v218, %v248
        %v436 = vsel %vm431, %v219, %v249
        %v437 = vsel %vm431, %v220, %v250
        %vm438 = vcmask 261120
        %v439 = vsel %vm438, %v432, %v275
        %v440 = vsel %vm438, %v433, %v276
        %v441 = vsel %vm438, %v434, %v277
        %v442 = vsel %vm438, %v435, %v278
        %v443 = vsel %vm438, %v436, %v279
        %v444 = vsel %vm438, %v437, %v280
        %vm445 = vcmask 392192
        %v446 = vsel %vm445, %v439, %v305
        %v447 = vsel %vm445, %v440, %v306
        %v448 = vsel %vm445, %v441, %v307
        %v449 = vsel %vm445, %v442, %v308
        %v450 = vsel %vm445, %v443, %v309
        %v451 = vsel %vm445, %v444, %v310
        %vm452 = vcmask 523264
        %v453 = vsel %vm452, %v446, %v335
        %v454 = vsel %vm452, %v447, %v336
        %v455 = vsel %vm452, %v448, %v337
        %v456 = vsel %vm452, %v449, %v338
        %v457 = vsel %vm452, %v450, %v339
        %v458 = vsel %vm452, %v451, %v340
        %vm459 = vcmask 654336
        %v460 = vsel %vm459, %v453, %v365
        %v461 = vsel %vm459, %v454, %v366
        %v462 = vsel %vm459, %v455, %v367
        %v463 = vsel %vm459, %v456, %v368
        %v464 = vsel %vm459, %v457, %v369
        %v465 = vsel %vm459, %v458, %v370
        %vm466 = vcmask 785408
        %v467 = vsel %vm466, %v460, %v395
        %v468 = vsel %vm466, %v461, %v396
        %v469 = vsel %vm466, %v462, %v397
        %v470 = vsel %vm466, %v463, %v398
        %v471 = vsel %vm466, %v464, %v399
        %v472 = vsel %vm466, %v465, %v400
        %vm473 = vcmask 916480
        %v474 = vsel %vm473, %v467, %v425
        %v475 = vsel %vm473, %v468, %v426
        %v476 = vsel %vm473, %v469, %v427
        %v477 = vsel %vm473, %v470, %v428
        %v478 = vsel %vm473, %v471, %v429
        %v479 = vsel %vm473, %v472, %v430
        %v480 = vld [vmem:[%s2] sm:$0x1]
        %v482 = vlaneseq
        %v483 = vshrl.u32 %v482, 7
        %v484 = vsub.s32 0, %v483
        %v485 = vrot.slane %v480, %v484
        %v487 = vadd.f32 %v474, %v485
        %v488 = vadd.f32 %v475, %v485
        %v489 = vadd.f32 %v476, %v485
        %v490 = vadd.f32 %v477, %v485
        %v491 = vadd.f32 %v478, %v485
        %v492 = vadd.f32 %v479, %v485
        %v493 = vand.u32 2147483647, %v487
        %vm494 = vcmp.le.f32.partialorder %v493, 0.7853982
        %vm495 = vcmp.lt.s32.totalorder %v487, 0
        %v496 = vand.u32 %v487, 2139095040
        %v497 = vshrl.u32 %v496, 23
        %v498 = vsub.s32 %v497, 127
        %v499 = vand.u32 2147483647, %v487
        %v500 = vand.u32 %v499, 8388607
        %v501 = vor.u32 %v500, 8388608
        %v502 = vsub.s32 0, %v501
        %v503 = vadd.s32 %v498, 1
        %vm504 = vcmp.gt.s32.totalorder %v503, 0
        %v505 = vsel %vm504, %v503, 0
        %v506 = vshrl.u32 %v505, 5
        %v507 = vand.u32 %v505, 31
        %v508 = vsub.s32 32, %v507
        %v509 = vshrl.u32 683565275, %v508
        %v510 = vshll.u32 683565275, %v507
        %v511 = vshrl.u32 2475754826, %v508
        %v512 = vor.u32 %v510, %v511
        %v513 = vshll.u32 2475754826, %v507
        %v514 = vshrl.u32 2131351028, %v508
        %v515 = vor.u32 %v513, %v514
        %v516 = vshll.u32 2131351028, %v507
        %v517 = vshrl.u32 2102212464, %v508
        %v518 = vor.u32 %v516, %v517
        %v519 = vshll.u32 2102212464, %v507
        %v520 = vshrl.u32 920167782, %v508
        %v521 = vor.u32 %v519, %v520
        %v522 = vshll.u32 920167782, %v507
        %v523 = vshrl.u32 1326507024, %v508
        %v524 = vor.u32 %v522, %v523
        %vm525 = vcmp.lt.s32.totalorder %v506, 1
        %vm526 = vcmp.lt.s32.totalorder %v506, 2
        %vm527 = vcmp.lt.s32.totalorder %v506, 3
        %vm528 = vcmp.lt.s32.totalorder %v506, 4
        %v529 = vsel %vm525, %v509, %v512
        %v530 = vsel %vm528, %v518, 2102212464
        %v531 = vsel %vm527, %v515, %v530
        %v532 = vsel %vm526, %v529, %v531
        %v533 = vsel %vm525, %v512, %v515
        %v534 = vsel %vm528, %v521, 920167782
        %v535 = vsel %vm527, %v518, %v534
        %v536 = vsel %vm526, %v533, %v535
        %v537 = vsel %vm525, %v515, %v518
        %v538 = vsel %vm528, %v524, 1326507024
        %v539 = vsel %vm527, %v521, %v538
        %v540 = vsel %vm526, %v537, %v539
        %v541 = vshll.u32 %v501, 8
        %v542 = vmul.u32.u64.compose %v541, %v540
        %v543 = vextract.low.u32 %v542
        %v544 = vextract.high.u32 %v542
        %v545 = vmul.u32.u64.compose %v541, %v536
        %v546 = vextract.low.u32 %v545
        %v547 = vextract.high.u32 %v545
        %v548 = vmul.u32 %v541, %v532
        %v549 = vadd.s32 %v544, %v546
        %vm550 = vc.u32 %v544, %v546
        %v551 = vadd.s32 %v547, 1
        %v552 = vsel %vm550, %v551, %v547
        %v553 = vadd.s32 %v548, %v552
        %v554 = vadd.s32 %v553, 536870912
        %v555 = vshrl.u32 %v554, 30
        %v556 = vshll.u32 %v555, 30
        %v557 = vsub.s32 %v553, %v556
        %vm558 = vcmp.lt.s32.totalorder %v557, 0
        %v559 = vsub.s32 0, %v557
        %v560 = vsel %vm558, %v559, %v557
        %v561 = vclz %v560
        %v562 = vsub.s32 %v561, 2
        %vm563 = vcmp.gt.s32.totalorder 0, %v562
        %v564 = vsel %vm563, 0, %v562
        %v565 = vsub.s32 32, %v564
        %v566 = vshll.u32 %v557, %v564
        %v567 = vshrl.u32 %v549, %v565
        %v568 = vor.u32 %v566, %v567
        %v569 = vsub.s32 4294967266, %v564
        %v570 = vadd.s32 %v569, 127
        %v571 = vshll.u32 %v570, 23
        %v572 = vor.u32 4788187, %v571
        %v573 = vand.u32 2147483647, %v572
        %v575 = vcvt.s32.f32 %v568
        %v576 = vmul.f32 %v575, %v573
        %v577 = vxor.u32 %v576, 2147483648
        %v578 = vsel %vm495, %v577, %v576
        %v579 = vsub.s32 4, %v555
        %v580 = vsel %vm495, %v579, %v555
        %v581 = vsel %vm494, %v487, %v578
        %v582 = vsel %vm494, 0, %v580
        %v583 = vcosq.f32.pop %v581
        %v584 = vsinq.f32.pop %v581
        %vm585 = vweird.f32 %v487
        %v586 = vand.u32 %v582, 3
        %vm587 = vcmp.lt.s32.totalorder %v586, 2
        %vm588 = vcmp.eq.s32.totalorder %v586, 0
        %v589 = vxor.u32 %v584, 2147483648
        %v590 = vsel %vm588, %v583, %v589
        %vm591 = vcmp.eq.s32.totalorder %v586, 2
        %v592 = vxor.u32 %v583, 2147483648
        %v593 = vsel %vm591, %v592, %v584
        %v594 = vsel %vm587, %v590, %v593
        %v595 = vsel %vm585, nan, %v594
        %v596 = vand.u32 2147483647, %v488
        %vm597 = vcmp.le.f32.partialorder %v596, 0.7853982
        %vm598 = vcmp.lt.s32.totalorder %v488, 0
        %v599 = vand.u32 %v488, 2139095040
        %v600 = vshrl.u32 %v599, 23
        %v601 = vsub.s32 %v600, 127
        %v602 = vand.u32 2147483647, %v488
        %v603 = vand.u32 %v602, 8388607
        %v604 = vor.u32 %v603, 8388608
        %v605 = vsub.s32 0, %v604
        %v606 = vadd.s32 %v601, 1
        %vm607 = vcmp.gt.s32.totalorder %v606, 0
        %v608 = vsel %vm607, %v606, 0
        %v609 = vshrl.u32 %v608, 5
        %v610 = vand.u32 %v608, 31
        %v611 = vsub.s32 32, %v610
        %v612 = vshrl.u32 683565275, %v611
        %v613 = vshll.u32 683565275, %v610
        %v614 = vshrl.u32 2475754826, %v611
        %v615 = vor.u32 %v613, %v614
        %v616 = vshll.u32 2475754826, %v610
        %v617 = vshrl.u32 2131351028, %v611
        %v618 = vor.u32 %v616, %v617
        %v619 = vshll.u32 2131351028, %v610
        %v620 = vshrl.u32 2102212464, %v611
        %v621 = vor.u32 %v619, %v620
        %v622 = vshll.u32 2102212464, %v610
        %v623 = vshrl.u32 920167782, %v611
        %v624 = vor.u32 %v622, %v623
        %v625 = vshll.u32 920167782, %v610
        %v626 = vshrl.u32 1326507024, %v611
        %v627 = vor.u32 %v625, %v626
        %vm628 = vcmp.lt.s32.totalorder %v609, 1
        %vm629 = vcmp.lt.s32.totalorder %v609, 2
        %vm630 = vcmp.lt.s32.totalorder %v609, 3
        %vm631 = vcmp.lt.s32.totalorder %v609, 4
        %v632 = vsel %vm628, %v612, %v615
        %v633 = vsel %vm631, %v621, 2102212464
        %v634 = vsel %vm630, %v618, %v633
        %v635 = vsel %vm629, %v632, %v634
        %v636 = vsel %vm628, %v615, %v618
        %v637 = vsel %vm631, %v624, 920167782
        %v638 = vsel %vm630, %v621, %v637
        %v639 = vsel %vm629, %v636, %v638
        %v640 = vsel %vm628, %v618, %v621
        %v641 = vsel %vm631, %v627, 1326507024
        %v642 = vsel %vm630, %v624, %v641
        %v643 = vsel %vm629, %v640, %v642
        %v644 = vshll.u32 %v604, 8
        %v645 = vmul.u32.u64.compose %v644, %v643
        %v646 = vextract.low.u32 %v645
        %v647 = vextract.high.u32 %v645
        %v648 = vmul.u32.u64.compose %v644, %v639
        %v649 = vextract.low.u32 %v648
        %v650 = vextract.high.u32 %v648
        %v651 = vmul.u32 %v644, %v635
        %v652 = vadd.s32 %v647, %v649
        %vm653 = vc.u32 %v647, %v649
        %v654 = vadd.s32 %v650, 1
        %v655 = vsel %vm653, %v654, %v650
        %v656 = vadd.s32 %v651, %v655
        %v657 = vadd.s32 %v656, 536870912
        %v658 = vshrl.u32 %v657, 30
        %v659 = vshll.u32 %v658, 30
        %v660 = vsub.s32 %v656, %v659
        %vm661 = vcmp.lt.s32.totalorder %v660, 0
        %v662 = vsub.s32 0, %v660
        %v663 = vsel %vm661, %v662, %v660
        %v664 = vclz %v663
        %v665 = vsub.s32 %v664, 2
        %vm666 = vcmp.gt.s32.totalorder 0, %v665
        %v667 = vsel %vm666, 0, %v665
        %v668 = vsub.s32 32, %v667
        %v669 = vshll.u32 %v660, %v667
        %v670 = vshrl.u32 %v652, %v668
        %v671 = vor.u32 %v669, %v670
        %v672 = vsub.s32 4294967266, %v667
        %v673 = vadd.s32 %v672, 127
        %v674 = vshll.u32 %v673, 23
        %v675 = vor.u32 4788187, %v674
        %v676 = vand.u32 2147483647, %v675
        %v678 = vcvt.s32.f32 %v671
        %v679 = vmul.f32 %v678, %v676
        %v680 = vxor.u32 %v679, 2147483648
        %v681 = vsel %vm598, %v680, %v679
        %v682 = vsub.s32 4, %v658
        %v683 = vsel %vm598, %v682, %v658
        %v684 = vsel %vm597, %v488, %v681
        %v685 = vsel %vm597, 0, %v683
        %v686 = vcosq.f32.pop %v684
        %v687 = vsinq.f32.pop %v684
        %vm688 = vweird.f32 %v488
        %v689 = vand.u32 %v685, 3
        %vm690 = vcmp.lt.s32.totalorder %v689, 2
        %vm691 = vcmp.eq.s32.totalorder %v689, 0
        %v692 = vxor.u32 %v687, 2147483648
        %v693 = vsel %vm691, %v686, %v692
        %vm694 = vcmp.eq.s32.totalorder %v689, 2
        %v695 = vxor.u32 %v686, 2147483648
        %v696 = vsel %vm694, %v695, %v687
        %v697 = vsel %vm690, %v693, %v696
        %v698 = vsel %vm688, nan, %v697
        %v699 = vand.u32 2147483647, %v489
        %vm700 = vcmp.le.f32.partialorder %v699, 0.7853982
        %vm701 = vcmp.lt.s32.totalorder %v489, 0
        %v702 = vand.u32 %v489, 2139095040
        %v703 = vshrl.u32 %v702, 23
        %v704 = vsub.s32 %v703, 127
        %v705 = vand.u32 2147483647, %v489
        %v706 = vand.u32 %v705, 8388607
        %v707 = vor.u32 %v706, 8388608
        %v708 = vsub.s32 0, %v707
        %v709 = vadd.s32 %v704, 1
        %vm710 = vcmp.gt.s32.totalorder %v709, 0
        %v711 = vsel %vm710, %v709, 0
        %v712 = vshrl.u32 %v711, 5
        %v713 = vand.u32 %v711, 31
        %v714 = vsub.s32 32, %v713
        %v715 = vshrl.u32 683565275, %v714
        %v716 = vshll.u32 683565275, %v713
        %v717 = vshrl.u32 2475754826, %v714
        %v718 = vor.u32 %v716, %v717
        %v719 = vshll.u32 2475754826, %v713
        %v720 = vshrl.u32 2131351028, %v714
        %v721 = vor.u32 %v719, %v720
        %v722 = vshll.u32 2131351028, %v713
        %v723 = vshrl.u32 2102212464, %v714
        %v724 = vor.u32 %v722, %v723
        %v725 = vshll.u32 2102212464, %v713
        %v726 = vshrl.u32 920167782, %v714
        %v727 = vor.u32 %v725, %v726
        %v728 = vshll.u32 920167782, %v713
        %v729 = vshrl.u32 1326507024, %v714
        %v730 = vor.u32 %v728, %v729
        %vm731 = vcmp.lt.s32.totalorder %v712, 1
        %vm732 = vcmp.lt.s32.totalorder %v712, 2
        %vm733 = vcmp.lt.s32.totalorder %v712, 3
        %vm734 = vcmp.lt.s32.totalorder %v712, 4
        %v735 = vsel %vm731, %v715, %v718
        %v736 = vsel %vm734, %v724, 2102212464
        %v737 = vsel %vm733, %v721, %v736
        %v738 = vsel %vm732, %v735, %v737
        %v739 = vsel %vm731, %v718, %v721
        %v740 = vsel %vm734, %v727, 920167782
        %v741 = vsel %vm733, %v724, %v740
        %v742 = vsel %vm732, %v739, %v741
        %v743 = vsel %vm731, %v721, %v724
        %v744 = vsel %vm734, %v730, 1326507024
        %v745 = vsel %vm733, %v727, %v744
        %v746 = vsel %vm732, %v743, %v745
        %v747 = vshll.u32 %v707, 8
        %v748 = vmul.u32.u64.compose %v747, %v746
        %v749 = vextract.low.u32 %v748
        %v750 = vextract.high.u32 %v748
        %v751 = vmul.u32.u64.compose %v747, %v742
        %v752 = vextract.low.u32 %v751
        %v753 = vextract.high.u32 %v751
        %v754 = vmul.u32 %v747, %v738
        %v755 = vadd.s32 %v750, %v752
        %vm756 = vc.u32 %v750, %v752
        %v757 = vadd.s32 %v753, 1
        %v758 = vsel %vm756, %v757, %v753
        %v759 = vadd.s32 %v754, %v758
        %v760 = vadd.s32 %v759, 536870912
        %v761 = vshrl.u32 %v760, 30
        %v762 = vshll.u32 %v761, 30
        %v763 = vsub.s32 %v759, %v762
        %vm764 = vcmp.lt.s32.totalorder %v763, 0
        %v765 = vsub.s32 0, %v763
        %v766 = vsel %vm764, %v765, %v763
        %v767 = vclz %v766
        %v768 = vsub.s32 %v767, 2
        %vm769 = vcmp.gt.s32.totalorder 0, %v768
        %v770 = vsel %vm769, 0, %v768
        %v771 = vsub.s32 32, %v770
        %v772 = vshll.u32 %v763, %v770
        %v773 = vshrl.u32 %v755, %v771
        %v774 = vor.u32 %v772, %v773
        %v775 = vsub.s32 4294967266, %v770
        %v776 = vadd.s32 %v775, 127
        %v777 = vshll.u32 %v776, 23
        %v778 = vor.u32 4788187, %v777
        %v779 = vand.u32 2147483647, %v778
        %v781 = vcvt.s32.f32 %v774
        %v782 = vmul.f32 %v781, %v779
        %v783 = vxor.u32 %v782, 2147483648
        %v784 = vsel %vm701, %v783, %v782
        %v785 = vsub.s32 4, %v761
        %v786 = vsel %vm701, %v785, %v761
        %v787 = vsel %vm700, %v489, %v784
        %v788 = vsel %vm700, 0, %v786
        %v789 = vcosq.f32.pop %v787
        %v790 = vsinq.f32.pop %v787
        %vm791 = vweird.f32 %v489
        %v792 = vand.u32 %v788, 3
        %vm793 = vcmp.lt.s32.totalorder %v792, 2
        %vm794 = vcmp.eq.s32.totalorder %v792, 0
        %v795 = vxor.u32 %v790, 2147483648
        %v796 = vsel %vm794, %v789, %v795
        %vm797 = vcmp.eq.s32.totalorder %v792, 2
        %v798 = vxor.u32 %v789, 2147483648
        %v799 = vsel %vm797, %v798, %v790
        %v800 = vsel %vm793, %v796, %v799
        %v801 = vsel %vm791, nan, %v800
        %v802 = vand.u32 2147483647, %v490
        %vm803 = vcmp.le.f32.partialorder %v802, 0.7853982
        %vm804 = vcmp.lt.s32.totalorder %v490, 0
        %v805 = vand.u32 %v490, 2139095040
        %v806 = vshrl.u32 %v805, 23
        %v807 = vsub.s32 %v806, 127
        %v808 = vand.u32 2147483647, %v490
        %v809 = vand.u32 %v808, 8388607
        %v810 = vor.u32 %v809, 8388608
        %v811 = vsub.s32 0, %v810
        %v812 = vadd.s32 %v807, 1
        %vm813 = vcmp.gt.s32.totalorder %v812, 0
        %v814 = vsel %vm813, %v812, 0
        %v815 = vshrl.u32 %v814, 5
        %v816 = vand.u32 %v814, 31
        %v817 = vsub.s32 32, %v816
        %v818 = vshrl.u32 683565275, %v817
        %v819 = vshll.u32 683565275, %v816
        %v820 = vshrl.u32 2475754826, %v817
        %v821 = vor.u32 %v819, %v820
        %v822 = vshll.u32 2475754826, %v816
        %v823 = vshrl.u32 2131351028, %v817
        %v824 = vor.u32 %v822, %v823
        %v825 = vshll.u32 2131351028, %v816
        %v826 = vshrl.u32 2102212464, %v817
        %v827 = vor.u32 %v825, %v826
        %v828 = vshll.u32 2102212464, %v816
        %v829 = vshrl.u32 920167782, %v817
        %v830 = vor.u32 %v828, %v829
        %v831 = vshll.u32 920167782, %v816
        %v832 = vshrl.u32 1326507024, %v817
        %v833 = vor.u32 %v831, %v832
        %vm834 = vcmp.lt.s32.totalorder %v815, 1
        %vm835 = vcmp.lt.s32.totalorder %v815, 2
        %vm836 = vcmp.lt.s32.totalorder %v815, 3
        %vm837 = vcmp.lt.s32.totalorder %v815, 4
        %v838 = vsel %vm834, %v818, %v821
        %v839 = vsel %vm837, %v827, 2102212464
        %v840 = vsel %vm836, %v824, %v839
        %v841 = vsel %vm835, %v838, %v840
        %v842 = vsel %vm834, %v821, %v824
        %v843 = vsel %vm837, %v830, 920167782
        %v844 = vsel %vm836, %v827, %v843
        %v845 = vsel %vm835, %v842, %v844
        %v846 = vsel %vm834, %v824, %v827
        %v847 = vsel %vm837, %v833, 1326507024
        %v848 = vsel %vm836, %v830, %v847
        %v849 = vsel %vm835, %v846, %v848
        %v850 = vshll.u32 %v810, 8
        %v851 = vmul.u32.u64.compose %v850, %v849
        %v852 = vextract.low.u32 %v851
        %v853 = vextract.high.u32 %v851
        %v854 = vmul.u32.u64.compose %v850, %v845
        %v855 = vextract.low.u32 %v854
        %v856 = vextract.high.u32 %v854
        %v857 = vmul.u32 %v850, %v841
        %v858 = vadd.s32 %v853, %v855
        %vm859 = vc.u32 %v853, %v855
        %v860 = vadd.s32 %v856, 1
        %v861 = vsel %vm859, %v860, %v856
        %v862 = vadd.s32 %v857, %v861
        %v863 = vadd.s32 %v862, 536870912
        %v864 = vshrl.u32 %v863, 30
        %v865 = vshll.u32 %v864, 30
        %v866 = vsub.s32 %v862, %v865
        %vm867 = vcmp.lt.s32.totalorder %v866, 0
        %v868 = vsub.s32 0, %v866
        %v869 = vsel %vm867, %v868, %v866
        %v870 = vclz %v869
        %v871 = vsub.s32 %v870, 2
        %vm872 = vcmp.gt.s32.totalorder 0, %v871
        %v873 = vsel %vm872, 0, %v871
        %v874 = vsub.s32 32, %v873
        %v875 = vshll.u32 %v866, %v873
        %v876 = vshrl.u32 %v858, %v874
        %v877 = vor.u32 %v875, %v876
        %v878 = vsub.s32 4294967266, %v873
        %v879 = vadd.s32 %v878, 127
        %v880 = vshll.u32 %v879, 23
        %v881 = vor.u32 4788187, %v880
        %v882 = vand.u32 2147483647, %v881
        %v884 = vcvt.s32.f32 %v877
        %v885 = vmul.f32 %v884, %v882
        %v886 = vxor.u32 %v885, 2147483648
        %v887 = vsel %vm804, %v886, %v885
        %v888 = vsub.s32 4, %v864
        %v889 = vsel %vm804, %v888, %v864
        %v890 = vsel %vm803, %v490, %v887
        %v891 = vsel %vm803, 0, %v889
        %v892 = vcosq.f32.pop %v890
        %v893 = vsinq.f32.pop %v890
        %vm894 = vweird.f32 %v490
        %v895 = vand.u32 %v891, 3
        %vm896 = vcmp.lt.s32.totalorder %v895, 2
        %vm897 = vcmp.eq.s32.totalorder %v895, 0
        %v898 = vxor.u32 %v893, 2147483648
        %v899 = vsel %vm897, %v892, %v898
        %vm900 = vcmp.eq.s32.totalorder %v895, 2
        %v901 = vxor.u32 %v892, 2147483648
        %v902 = vsel %vm900, %v901, %v893
        %v903 = vsel %vm896, %v899, %v902
        %v904 = vsel %vm894, nan, %v903
        %v905 = vand.u32 2147483647, %v491
        %vm906 = vcmp.le.f32.partialorder %v905, 0.7853982
        %vm907 = vcmp.lt.s32.totalorder %v491, 0
        %v908 = vand.u32 %v491, 2139095040
        %v909 = vshrl.u32 %v908, 23
        %v910 = vsub.s32 %v909, 127
        %v911 = vand.u32 2147483647, %v491
        %v912 = vand.u32 %v911, 8388607
        %v913 = vor.u32 %v912, 8388608
        %v914 = vsub.s32 0, %v913
        %v915 = vadd.s32 %v910, 1
        %vm916 = vcmp.gt.s32.totalorder %v915, 0
        %v917 = vsel %vm916, %v915, 0
        %v918 = vshrl.u32 %v917, 5
        %v919 = vand.u32 %v917, 31
        %v920 = vsub.s32 32, %v919
        %v921 = vshrl.u32 683565275, %v920
        %v922 = vshll.u32 683565275, %v919
        %v923 = vshrl.u32 2475754826, %v920
        %v924 = vor.u32 %v922, %v923
        %v925 = vshll.u32 2475754826, %v919
        %v926 = vshrl.u32 2131351028, %v920
        %v927 = vor.u32 %v925, %v926
        %v928 = vshll.u32 2131351028, %v919
        %v929 = vshrl.u32 2102212464, %v920
        %v930 = vor.u32 %v928, %v929
        %v931 = vshll.u32 2102212464, %v919
        %v932 = vshrl.u32 920167782, %v920
        %v933 = vor.u32 %v931, %v932
        %v934 = vshll.u32 920167782, %v919
        %v935 = vshrl.u32 1326507024, %v920
        %v936 = vor.u32 %v934, %v935
        %vm937 = vcmp.lt.s32.totalorder %v918, 1
        %vm938 = vcmp.lt.s32.totalorder %v918, 2
        %vm939 = vcmp.lt.s32.totalorder %v918, 3
        %vm940 = vcmp.lt.s32.totalorder %v918, 4
        %v941 = vsel %vm937, %v921, %v924
        %v942 = vsel %vm940, %v930, 2102212464
        %v943 = vsel %vm939, %v927, %v942
        %v944 = vsel %vm938, %v941, %v943
        %v945 = vsel %vm937, %v924, %v927
        %v946 = vsel %vm940, %v933, 920167782
        %v947 = vsel %vm939, %v930, %v946
        %v948 = vsel %vm938, %v945, %v947
        %v949 = vsel %vm937, %v927, %v930
        %v950 = vsel %vm940, %v936, 1326507024
        %v951 = vsel %vm939, %v933, %v950
        %v952 = vsel %vm938, %v949, %v951
        %v953 = vshll.u32 %v913, 8
        %v954 = vmul.u32.u64.compose %v953, %v952
        %v955 = vextract.low.u32 %v954
        %v956 = vextract.high.u32 %v954
        %v957 = vmul.u32.u64.compose %v953, %v948
        %v958 = vextract.low.u32 %v957
        %v959 = vextract.high.u32 %v957
        %v960 = vmul.u32 %v953, %v944
        %v961 = vadd.s32 %v956, %v958
        %vm962 = vc.u32 %v956, %v958
        %v963 = vadd.s32 %v959, 1
        %v964 = vsel %vm962, %v963, %v959
        %v965 = vadd.s32 %v960, %v964
        %v966 = vadd.s32 %v965, 536870912
        %v967 = vshrl.u32 %v966, 30
        %v968 = vshll.u32 %v967, 30
        %v969 = vsub.s32 %v965, %v968
        %vm970 = vcmp.lt.s32.totalorder %v969, 0
        %v971 = vsub.s32 0, %v969
        %v972 = vsel %vm970, %v971, %v969
        %v973 = vclz %v972
        %v974 = vsub.s32 %v973, 2
        %vm975 = vcmp.gt.s32.totalorder 0, %v974
        %v976 = vsel %vm975, 0, %v974
        %v977 = vsub.s32 32, %v976
        %v978 = vshll.u32 %v969, %v976
        %v979 = vshrl.u32 %v961, %v977
        %v980 = vor.u32 %v978, %v979
        %v981 = vsub.s32 4294967266, %v976
        %v982 = vadd.s32 %v981, 127
        %v983 = vshll.u32 %v982, 23
        %v984 = vor.u32 4788187, %v983
        %v985 = vand.u32 2147483647, %v984
        %v987 = vcvt.s32.f32 %v980
        %v988 = vmul.f32 %v987, %v985
        %v989 = vxor.u32 %v988, 2147483648
        %v990 = vsel %vm907, %v989, %v988
        %v991 = vsub.s32 4, %v967
        %v992 = vsel %vm907, %v991, %v967
        %v993 = vsel %vm906, %v491, %v990
        %v994 = vsel %vm906, 0, %v992
        %v995 = vcosq.f32.pop %v993
        %v996 = vsinq.f32.pop %v993
        %vm997 = vweird.f32 %v491
        %v998 = vand.u32 %v994, 3
        %vm999 = vcmp.lt.s32.totalorder %v998, 2
        %vm1000 = vcmp.eq.s32.totalorder %v998, 0
        %v1001 = vxor.u32 %v996, 2147483648
        %v1002 = vsel %vm1000, %v995, %v1001
        %vm1003 = vcmp.eq.s32.totalorder %v998, 2
        %v1004 = vxor.u32 %v995, 2147483648
        %v1005 = vsel %vm1003, %v1004, %v996
        %v1006 = vsel %vm999, %v1002, %v1005
        %v1007 = vsel %vm997, nan, %v1006
        %v1008 = vand.u32 2147483647, %v492
        %vm1009 = vcmp.le.f32.partialorder %v1008, 0.7853982
        %vm1010 = vcmp.lt.s32.totalorder %v492, 0
        %v1011 = vand.u32 %v492, 2139095040
        %v1012 = vshrl.u32 %v1011, 23
        %v1013 = vsub.s32 %v1012, 127
        %v1014 = vand.u32 2147483647, %v492
        %v1015 = vand.u32 %v1014, 8388607
        %v1016 = vor.u32 %v1015, 8388608
        %v1017 = vsub.s32 0, %v1016
        %v1018 = vadd.s32 %v1013, 1
        %vm1019 = vcmp.gt.s32.totalorder %v1018, 0
        %v1020 = vsel %vm1019, %v1018, 0
        %v1021 = vshrl.u32 %v1020, 5
        %v1022 = vand.u32 %v1020, 31
        %v1023 = vsub.s32 32, %v1022
        %v1024 = vshrl.u32 683565275, %v1023
        %v1025 = vshll.u32 683565275, %v1022
        %v1026 = vshrl.u32 2475754826, %v1023
        %v1027 = vor.u32 %v1025, %v1026
        %v1028 = vshll.u32 2475754826, %v1022
        %v1029 = vshrl.u32 2131351028, %v1023
        %v1030 = vor.u32 %v1028, %v1029
        %v1031 = vshll.u32 2131351028, %v1022
        %v1032 = vshrl.u32 2102212464, %v1023
        %v1033 = vor.u32 %v1031, %v1032
        %v1034 = vshll.u32 2102212464, %v1022
        %v1035 = vshrl.u32 920167782, %v1023
        %v1036 = vor.u32 %v1034, %v1035
        %v1037 = vshll.u32 920167782, %v1022
        %v1038 = vshrl.u32 1326507024, %v1023
        %v1039 = vor.u32 %v1037, %v1038
        %vm1040 = vcmp.lt.s32.totalorder %v1021, 1
        %vm1041 = vcmp.lt.s32.totalorder %v1021, 2
        %vm1042 = vcmp.lt.s32.totalorder %v1021, 3
        %vm1043 = vcmp.lt.s32.totalorder %v1021, 4
        %v1044 = vsel %vm1040, %v1024, %v1027
        %v1045 = vsel %vm1043, %v1033, 2102212464
        %v1046 = vsel %vm1042, %v1030, %v1045
        %v1047 = vsel %vm1041, %v1044, %v1046
        %v1048 = vsel %vm1040, %v1027, %v1030
        %v1049 = vsel %vm1043, %v1036, 920167782
        %v1050 = vsel %vm1042, %v1033, %v1049
        %v1051 = vsel %vm1041, %v1048, %v1050
        %v1052 = vsel %vm1040, %v1030, %v1033
        %v1053 = vsel %vm1043, %v1039, 1326507024
        %v1054 = vsel %vm1042, %v1036, %v1053
        %v1055 = vsel %vm1041, %v1052, %v1054
        %v1056 = vshll.u32 %v1016, 8
        %v1057 = vmul.u32.u64.compose %v1056, %v1055
        %v1058 = vextract.low.u32 %v1057
        %v1059 = vextract.high.u32 %v1057
        %v1060 = vmul.u32.u64.compose %v1056, %v1051
        %v1061 = vextract.low.u32 %v1060
        %v1062 = vextract.high.u32 %v1060
        %v1063 = vmul.u32 %v1056, %v1047
        %v1064 = vadd.s32 %v1059, %v1061
        %vm1065 = vc.u32 %v1059, %v1061
        %v1066 = vadd.s32 %v1062, 1
        %v1067 = vsel %vm1065, %v1066, %v1062
        %v1068 = vadd.s32 %v1063, %v1067
        %v1069 = vadd.s32 %v1068, 536870912
        %v1070 = vshrl.u32 %v1069, 30
        %v1071 = vshll.u32 %v1070, 30
        %v1072 = vsub.s32 %v1068, %v1071
        %vm1073 = vcmp.lt.s32.totalorder %v1072, 0
        %v1074 = vsub.s32 0, %v1072
        %v1075 = vsel %vm1073, %v1074, %v1072
        %v1076 = vclz %v1075
        %v1077 = vsub.s32 %v1076, 2
        %vm1078 = vcmp.gt.s32.totalorder 0, %v1077
        %v1079 = vsel %vm1078, 0, %v1077
        %v1080 = vsub.s32 32, %v1079
        %v1081 = vshll.u32 %v1072, %v1079
        %v1082 = vshrl.u32 %v1064, %v1080
        %v1083 = vor.u32 %v1081, %v1082
        %v1084 = vsub.s32 4294967266, %v1079
        %v1085 = vadd.s32 %v1084, 127
        %v1086 = vshll.u32 %v1085, 23
        %v1087 = vor.u32 4788187, %v1086
        %v1088 = vand.u32 2147483647, %v1087
        %v1090 = vcvt.s32.f32 %v1083
        %v1091 = vmul.f32 %v1090, %v1088
        %v1092 = vxor.u32 %v1091, 2147483648
        %v1093 = vsel %vm1010, %v1092, %v1091
        %v1094 = vsub.s32 4, %v1070
        %v1095 = vsel %vm1010, %v1094, %v1070
        %v1096 = vsel %vm1009, %v492, %v1093
        %v1097 = vsel %vm1009, 0, %v1095
        %v1098 = vcosq.f32.pop %v1096
        %v1099 = vsinq.f32.pop %v1096
        %vm1100 = vweird.f32 %v492
        %v1101 = vand.u32 %v1097, 3
        %vm1102 = vcmp.lt.s32.totalorder %v1101, 2
        %vm1103 = vcmp.eq.s32.totalorder %v1101, 0
        %v1104 = vxor.u32 %v1099, 2147483648
        %v1105 = vsel %vm1103, %v1098, %v1104
        %vm1106 = vcmp.eq.s32.totalorder %v1101, 2
        %v1107 = vxor.u32 %v1098, 2147483648
        %v1108 = vsel %vm1106, %v1107, %v1099
        %v1109 = vsel %vm1102, %v1105, %v1108
        %v1110 = vsel %vm1100, nan, %v1109
        %1111 = vst [vmem:[%s164] sm:$0xff] %v595
        %1112 = vst [vmem:[%s164 + $0x8] sm:$0xff] %v698
        %1113 = vst [vmem:[%s164 + $0x10] sm:$0xff] %v801
        %1114 = vst [vmem:[%s164 + $0x18] sm:$0xff] %v904
        %1115 = vst [vmem:[%s164 + $0x20] sm:$0xff] %v1007
        %1116 = vst [vmem:[%s164 + $0x28] sm:$0xff] %v1110
        %s1117 = sand.u32 %s93, 1
        %s1118 = scalar_lea.sflag [#allocation3], %s1117
        %s1119 = sand.u32 %s93, 1
        %s1120 = smul.addr %s1119, 48
        %s1121 = scalar_lea.vmem [#allocation2], %s1120
        // Predicated region
        $region33: #{tpu_custom_call.1} parent=31 // pred_check
          %p1122 = pneg %p103
        $region34: #{tpu_custom_call.1} parent=31 // pred_check_branch
          %1124 = sbr.rel (%p1122) target = $region36
        $region35: #{tpu_custom_call.1} parent=31 // pred_region
          %s1125 = smul.u32 6, %s17
          %s1127 = ssub.s32 768, 768
          %1128 = vsyncadd %s1118, %s1127
          %s1129 = smul.addr %s1125, 128
          %s1130 = scalar_lea.hbm %s3, %s1129
          %s1131 = sshll.u32 %s1121, 4
          %s1132 = int_to_ptr.vmem [resolvable:$true] %s1131
          %1137 = dma.vmem_to_hbm [thread:$0]  %s1132, 768, %s1130, %s1118, 128, 128, 8
        $region36: #{tpu_custom_call.1} parent=31 // pred_fallthru
          _
      $region32: #{tpu_custom_call.1} parent=5 // pred_fallthru
        _
      %p1138 = scmp.le.s32.totalorder 2, %s12
      // Predicated region
      $region37: #{tpu_custom_call.1} parent=5 // pred_check
        %p1139 = pneg %p1138
      $region38: #{tpu_custom_call.1} parent=5 // pred_check_branch
        %1141 = sbr.rel (%p1139) target = $region40
      $region39: #{tpu_custom_call.1} parent=5 // pred_region
        %s1142 = ssub.s32 %s12, 2
        // Predicated region
        $region41: #{tpu_custom_call.1} parent=39 // pred_check
          %p1143 = pneg %p109
        $region42: #{tpu_custom_call.1} parent=39 // pred_check_branch
          %1145 = sbr.rel (%p1143) target = $region44
        $region43: #{tpu_custom_call.1} parent=39 // pred_region
          %s1146 = sand.u32 %s94, 1
          %s1147 = scalar_lea.sflag [#allocation3], %s1146
          %s1148 = sand.u32 %s94, 1
          %s1149 = smul.addr %s1148, 48
          %s1150 = scalar_lea.vmem [#allocation2], %s1149
          %1151 = dma.done %s1147, 768
        $region44: #{tpu_custom_call.1} parent=39 // pred_fallthru
          _
      $region40: #{tpu_custom_call.1} parent=5 // pred_fallthru
        _
    $region6: #{tpu_custom_call.1} parent=1 // loop_footer
      %s16 = sadd.s32 1, %s12
    $region7: #{tpu_custom_call.1} parent=1 // loop_footer_branch
      %11 = sbr.rel target = $region3
    $region8: #{tpu_custom_call.1} parent=1 // loop_exit
      _
    %1152 = vsyncpa [#allocation3], 1
    %s1153 = scalar_lea.sflag [#allocation3], 1
    %1154 = vsyncpa %s1153, 1

</llo_original>
